<compile_context>
chip_gen: v7x
topology: tpu7x:2x2x1
jax: 0.10.0
libtpu: 0.0.40
codegen_flags: <defaults>
</compile_context>

<pallas_src>
import functools

import jax
import jax.numpy as jnp
from jax.experimental import pallas as pl
from jax.experimental.pallas import tpu as pltpu


def _round_up(n: int, m: int) -> int:
    return ((n + m - 1) // m) * m


def mlp_kernel(x_ref, w1_ref, w2_ref, b2_ref, w3t_ref, b3_ref, o_ref):
    # x_ref: (8, TILE_B) — batch on lanes, row 7 is all-ones (bias fold).
    x = x_ref[...]

    # Layer 1: (22,8) @ (8,TB)  (bias folded into the augmented weight) -> ReLU
    h1 = jnp.dot(w1_ref[...], x, preferred_element_type=jnp.float32)
    h1 = jnp.maximum(h1, 0.0)

    # Layer 2: (11,22) @ (22,TB) + (11,1) -> ReLU
    h2 = jnp.dot(w2_ref[...], h1, preferred_element_type=jnp.float32) + b2_ref[...]
    h2 = jnp.maximum(h2, 0.0)

    # Layer 3 on the VPU/XLU instead of the MXU: (11,1) * (11,TB) summed over
    # sublanes -> (1,TB).  Avoids an M=1,K=11 matmul sitting on the MXU push/pop
    # critical path (<1% MXU utilization there anyway).
    h3 = jnp.sum(w3t_ref[...] * h2, axis=0, keepdims=True) + b3_ref[...]

    # exp + reciprocal land on the EUP slot; lane-dense (1, TILE_B) store.
    o_ref[...] = jax.nn.sigmoid(h3)

    # NOTE(perf): if a bundle dump shows Mosaic reloading the stationary weight
    # tile per 128-lane strip of TILE_B, layers 1/2 could be driven explicitly
    # with pltpu.matmul_push_rhs / matmul_acc_lhs to park W1/W2 on the MXUs.


def _xla_forward(x, params):
    """Fused XLA path (used as small-batch fallback and as the reference)."""
    w1, b1, w2, b2, w3, b3 = params
    h = jnp.maximum(x @ w1.T + b1[:, 0], 0.0)
    h = jnp.maximum(h @ w2.T + b2[:, 0], 0.0)
    h = jax.nn.sigmoid(h @ w3.T + b3[:, 0])
    return h[:, 0]


@functools.partial(jax.jit, static_argnames=("tile_b", "min_pallas_batch"))
def mlp_forward(x, params, *, tile_b: int = 32768, min_pallas_batch: int = 2048):
    """x: (B, 7) float32 -> (B,) float32 (sigmoid outputs).

    params: (w1, b1, w2, b2, w3, b3) with w_i shaped (out, in) and b_i shaped
    (out, 1), i.e. the PyTorch nn.Linear layout (bias as a column).
    """
    w1, b1, w2, b2, w3, b3 = params
    B = x.shape[0]

    # Launch-overhead-dominated sizes: fused XLA matmul chain is faster than a
    # kernel launch + padding machinery.
    if B < min_pallas_batch:
        return _xla_forward(x, params)

    # Lane-aligned batch tile; pad the batch up to a multiple of it.
    if B <= tile_b:
        TILE_B = _round_up(max(B, 1), 128)
        B_pad = TILE_B
    else:
        TILE_B = tile_b
        B_pad = _round_up(B, TILE_B)

    # Single copy for operand prep: append a ones column (bias fold), pad the
    # batch, transpose to batch-on-lanes.  No zero-init + scatter round trip.
    x32 = x.astype(jnp.float32)
    x_aug = jnp.concatenate([x32, jnp.ones((B, 1), jnp.float32)], axis=1)  # (B, 8)
    if B_pad != B:
        x_aug = jnp.pad(x_aug, ((0, B_pad - B), (0, 0)))
    x_t = x_aug.T  # (8, B_pad); padded columns are all-zero -> finite outputs, sliced off.

    # Fold b1 into the layer-1 weight; pre-transpose w3 for the VPU layer-3 path.
    w1_aug = jnp.concatenate([w1, b1], axis=1)  # (22, 8)
    w3t = w3.T                                  # (11, 1)

    grid = (B_pad // TILE_B,)
    const = lambda shape: pl.BlockSpec(shape, lambda i: (0, 0))

    # Advisory cost model: HBM-bandwidth bound, not MXU bound.
    flops = 2 * B_pad * (8 * 22 + 22 * 11 + 11 * 1)
    bytes_accessed = (
        B_pad * 8 * 4 + B_pad * 4                     # x_aug read + out write
        + 4 * (22 * 8 + 11 * 22 + 11 + 11 + 1)        # resident weights/biases
    )
    cost = pl.CostEstimate(flops=flops, transcendentals=B_pad,
                           bytes_accessed=bytes_accessed)

    out = pl.pallas_call(
        mlp_kernel,
        out_shape=jax.ShapeDtypeStruct((1, B_pad), jnp.float32),
        grid=grid,
        in_specs=[
            pl.BlockSpec((8, TILE_B), lambda i: (0, i)),  # x tile, batch on lanes
            const(w1_aug.shape),
            const(w2.shape), const(b2.shape),
            const(w3t.shape), const(b3.shape),
        ],
        out_specs=pl.BlockSpec((1, TILE_B), lambda i: (0, i)),  # lane-dense output
        compiler_params=pltpu.CompilerParams(
            dimension_semantics=("parallel",),
            # ~300 B/element of VMEM at the default tile (~10 MiB); 48 MiB gives
            # headroom above the 16/32 MiB scoped defaults while staying well
            # inside v7x's 64 MiB/TC physical VMEM.
            vmem_limit_bytes=48 * 1024 * 1024,
        ),
        cost_estimate=cost,
    )(x_t, w1_aug, w2, b2, w3t, b3)

    # squeeze(-1) as in the PyTorch module (and drop batch padding).
    return out[0, :B]


def init_params(key):
    """Deterministic init matching PyTorch nn.Linear default:
    U(-1/sqrt(fan_in), +1/sqrt(fan_in)). Weights as (out, in); biases as (out, 1)."""
    dims = [(7, 22), (22, 11), (11, 1)]
    params = []
    keys = jax.random.split(key, 2 * len(dims))
    for i, (fan_in, fan_out) in enumerate(dims):
        bound = 1.0 / jnp.sqrt(jnp.float32(fan_in))
        w = jax.random.uniform(keys[2 * i], (fan_out, fan_in),
                               minval=-bound, maxval=bound, dtype=jnp.float32)
        b = jax.random.uniform(keys[2 * i + 1], (fan_out, 1),
                               minval=-bound, maxval=bound, dtype=jnp.float32)
        params.extend([w, b])
    return tuple(params)


def reference_forward(x, params):
    return _xla_forward(x, params)


if __name__ == "__main__":
    key = jax.random.PRNGKey(0)
    kp, k1, k2, k3 = jax.random.split(key, 4)
    params = init_params(kp)

    # 1) Non-multiple-of-128 batch, forced through the Pallas path
    #    (exercises padding + single-tile grid).
    B1 = 300
    x1 = jax.random.normal(k1, (B1, 7), dtype=jnp.float32)
    y1 = mlp_forward(x1, params, min_pallas_batch=0)
    jax.block_until_ready(y1)
    assert y1.shape == (B1,)
    assert jnp.allclose(y1, reference_forward(x1, params), atol=1e-5, rtol=1e-5)

    # 2) Multi-tile grid path (2 grid steps on the parallel batch axis).
    B2 = 8192
    x2 = jax.random.normal(k2, (B2, 7), dtype=jnp.float32)
    y2 = mlp_forward(x2, params, tile_b=4096, min_pallas_batch=0)
    jax.block_until_ready(y2)
    assert y2.shape == (B2,)
    assert jnp.allclose(y2, reference_forward(x2, params), atol=1e-5, rtol=1e-5)

    # 3) Tiny batch takes the fused-XLA fallback (launch-overhead dominated).
    B3 = 8
    x3 = jax.random.normal(k3, (B3, 7), dtype=jnp.float32)
    y3 = mlp_forward(x3, params)
    jax.block_until_ready(y3)
    assert y3.shape == (B3,)
    assert jnp.allclose(y3, reference_forward(x3, params), atol=1e-5, rtol=1e-5)

    print("KERNEL_OK")
</pallas_src>

<mosaic_0001>
module attributes {stable_mosaic.version = 11 : i64} {
  func.func @mlp_kernel(%arg0: i32, %arg1: memref<8x384xf32, #tpu.memory_space<vmem>>, %arg2: memref<22x8xf32, #tpu.memory_space<vmem>>, %arg3: memref<11x22xf32, #tpu.memory_space<vmem>>, %arg4: memref<11x1xf32, #tpu.memory_space<vmem>>, %arg5: memref<11x1xf32, #tpu.memory_space<vmem>>, %arg6: memref<1x1xf32, #tpu.memory_space<vmem>>, %arg7: memref<1x384xf32, #tpu.memory_space<vmem>>) attributes {dimension_semantics = [#tpu.dimension_semantics<parallel>], iteration_bounds = array<i64: 1>, scalar_prefetch = 0 : i64, scratch_operands = 0 : i64, tpu.core_type = #tpu.core_type<tc>, window_params = [{transform_indices = @transform_0, window_bounds = array<i64: 8, 384>}, {pipeline_mode = #tpu.pipeline_mode<synchronous>, transform_indices = @transform_1, window_bounds = array<i64: 22, 8>}, {pipeline_mode = #tpu.pipeline_mode<synchronous>, transform_indices = @transform_2, window_bounds = array<i64: 11, 22>}, {pipeline_mode = #tpu.pipeline_mode<synchronous>, transform_indices = @transform_3, window_bounds = array<i64: 11, 1>}, {pipeline_mode = #tpu.pipeline_mode<synchronous>, transform_indices = @transform_4, window_bounds = array<i64: 11, 1>}, {pipeline_mode = #tpu.pipeline_mode<synchronous>, transform_indices = @transform_5, window_bounds = array<i64: 1, 1>}, {transform_indices = @transform_6, window_bounds = array<i64: 1, 384>}]} {
    %c0 = arith.constant 0 : index
    %c0_0 = arith.constant 0 : index
    %0 = vector.load %arg1[%c0, %c0_0] : memref<8x384xf32, #tpu.memory_space<vmem>>, vector<8x384xf32>
    %c0_1 = arith.constant 0 : index
    %c0_2 = arith.constant 0 : index
    %1 = vector.load %arg2[%c0_1, %c0_2] : memref<22x8xf32, #tpu.memory_space<vmem>>, vector<22x8xf32>
    %cst = arith.constant dense<0.000000e+00> : vector<22x384xf32>
    %2 = tpu.matmul %1, %0, %cst {dimension_numbers = #tpu.dot_dimension_numbers<[1], [0], [0], [1], [0, 0, 1, 1], [], []>} : vector<22x8xf32>, vector<8x384xf32>, vector<22x384xf32> -> vector<22x384xf32>
    %cst_3 = arith.constant 0.000000e+00 : f32
    %3 = vector.broadcast %cst_3 : f32 to vector<22x384xf32>
    %4 = arith.maximumf %2, %3 : vector<22x384xf32>
    %c0_4 = arith.constant 0 : index
    %c0_5 = arith.constant 0 : index
    %5 = vector.load %arg3[%c0_4, %c0_5] : memref<11x22xf32, #tpu.memory_space<vmem>>, vector<11x22xf32>
    %cst_6 = arith.constant dense<0.000000e+00> : vector<11x384xf32>
    %6 = tpu.matmul %5, %4, %cst_6 {dimension_numbers = #tpu.dot_dimension_numbers<[1], [0], [0], [1], [0, 0, 1, 1], [], []>} : vector<11x22xf32>, vector<22x384xf32>, vector<11x384xf32> -> vector<11x384xf32>
    %c0_7 = arith.constant 0 : index
    %c0_8 = arith.constant 0 : index
    %7 = vector.load %arg4[%c0_7, %c0_8] : memref<11x1xf32, #tpu.memory_space<vmem>>, vector<11x1xf32>
    %8 = vector.broadcast %7 : vector<11x1xf32> to vector<11x384xf32>
    %9 = arith.addf %6, %8 : vector<11x384xf32>
    %cst_9 = arith.constant 0.000000e+00 : f32
    %10 = vector.broadcast %cst_9 : f32 to vector<11x384xf32>
    %11 = arith.maximumf %9, %10 : vector<11x384xf32>
    %c0_10 = arith.constant 0 : index
    %c0_11 = arith.constant 0 : index
    %12 = vector.load %arg5[%c0_10, %c0_11] : memref<11x1xf32, #tpu.memory_space<vmem>>, vector<11x1xf32>
    %13 = vector.broadcast %12 : vector<11x1xf32> to vector<11x384xf32>
    %14 = arith.mulf %13, %11 : vector<11x384xf32>
    %cst_12 = arith.constant dense<0.000000e+00> : vector<384xf32>
    %15 = vector.multi_reduction <add>, %14, %cst_12 [0] : vector<11x384xf32> to vector<384xf32>
    %16 = vector.shape_cast %15 : vector<384xf32> to vector<1x384xf32>
    %c0_13 = arith.constant 0 : index
    %c0_14 = arith.constant 0 : index
    %17 = vector.load %arg6[%c0_13, %c0_14] : memref<1x1xf32, #tpu.memory_space<vmem>>, vector<1x1xf32>
    %18 = vector.broadcast %17 : vector<1x1xf32> to vector<1x384xf32>
    %19 = arith.addf %16, %18 : vector<1x384xf32>
    %20 = arith.negf %19 : vector<1x384xf32>
    %21 = math.exp %20 : vector<1x384xf32>
    %cst_15 = arith.constant 1.000000e+00 : f32
    %22 = vector.broadcast %cst_15 : f32 to vector<1x384xf32>
    %23 = arith.addf %22, %21 : vector<1x384xf32>
    %24 = arith.divf %22, %23 : vector<1x384xf32>
    %c0_16 = arith.constant 0 : index
    %c0_17 = arith.constant 0 : index
    %25 = vector.load %arg7[%c0_16, %c0_17] : memref<1x384xf32, #tpu.memory_space<vmem>>, vector<1x384xf32>
    tpu.vector_store %arg7[%c0_16, %c0_17], %24 {strides = array<i32>} : memref<1x384xf32, #tpu.memory_space<vmem>>, vector<1x384xf32>,
    return
  }
  func.func @transform_0(%arg0: i32) -> (i32, i32) {
    %c0_i32 = arith.constant 0 : i32
    %c0_i32_0 = arith.constant 0 : i32
    return %c0_i32, %arg0 : i32, i32
  }
  func.func @transform_1(%arg0: i32) -> (i32, i32) {
    %c0_i32 = arith.constant 0 : i32
    %c0_i32_0 = arith.constant 0 : i32
    %c0_i32_1 = arith.constant 0 : i32
    return %c0_i32, %c0_i32_0 : i32, i32
  }
  func.func @transform_2(%arg0: i32) -> (i32, i32) {
    %c0_i32 = arith.constant 0 : i32
    %c0_i32_0 = arith.constant 0 : i32
    %c0_i32_1 = arith.constant 0 : i32
    return %c0_i32, %c0_i32_0 : i32, i32
  }
  func.func @transform_3(%arg0: i32) -> (i32, i32) {
    %c0_i32 = arith.constant 0 : i32
    %c0_i32_0 = arith.constant 0 : i32
    %c0_i32_1 = arith.constant 0 : i32
    return %c0_i32, %c0_i32_0 : i32, i32
  }
  func.func @transform_4(%arg0: i32) -> (i32, i32) {
    %c0_i32 = arith.constant 0 : i32
    %c0_i32_0 = arith.constant 0 : i32
    %c0_i32_1 = arith.constant 0 : i32
    return %c0_i32, %c0_i32_0 : i32, i32
  }
  func.func @transform_5(%arg0: i32) -> (i32, i32) {
    %c0_i32 = arith.constant 0 : i32
    %c0_i32_0 = arith.constant 0 : i32
    %c0_i32_1 = arith.constant 0 : i32
    return %c0_i32, %c0_i32_0 : i32, i32
  }
  func.func @transform_6(%arg0: i32) -> (i32, i32) {
    %c0_i32 = arith.constant 0 : i32
    %c0_i32_0 = arith.constant 0 : i32
    return %c0_i32, %arg0 : i32, i32
  }
}

</mosaic_0001>

<llo_original>
// kernel: mlp_forward.1
$region0: #{mlp_forward.1}
  #allocation0 [shape = 'u32[]', space=smem, size = 0x4, offset = 0x4, fixed_abs, tag = 'smem constant byte address 0x4 - core index']
  #allocation1 [shape = 'u32[144,128]{1,0:T(1,128)}', space=vmem, size = 0x12000, scoped, tag = 'internal scratch']
  #allocation2 [shape = 'f32[1,1]{1,0:T(1,128)S(1)}', space=vmem, size = 0x200, scoped, tag = 'scoped memory for mlp_forward.1']
  %s0 = inlined_call_operand.vmem [shape: f32[8,384], index: 0, kind: input, shape index: {}]
  %s1 = inlined_call_operand.vmem [shape: f32[22,8], index: 1, kind: input, shape index: {}]
  %s2 = inlined_call_operand.vmem [shape: f32[11,22], index: 2, kind: input, shape index: {}]
  %s3 = inlined_call_operand.vmem [shape: f32[11,1], index: 3, kind: input, shape index: {}]
  %s4 = inlined_call_operand.vmem [shape: f32[11,1], index: 4, kind: input, shape index: {}]
  %s5 = inlined_call_operand.<no memory space> [shape: f32[1,1], index: 5, kind: input, shape index: {}]
  %s6 = inlined_call_operand.vmem [shape: f32[1,384], index: 6, kind: output, shape index: {}]
  %s7 = sld [smem:[#allocation0]]
  $region34: #{mlp_forward.1} parent=0
    _
  %s9 = ssub.s32 1, %s7
  %s10 = scalar_select 0, %s9, %s7
  %v11 = vstv %s5
  %12 = vst [vmem:[#allocation2] sm:$0x1] %v11
  // Predicated region
  $region2: #{mlp_forward.1} parent=0 // pred_check
    _
  $region3: #{mlp_forward.1} parent=0 // pred_check_branch
    %14 = sbr.rel (0) target = $region5
  $region4: #{mlp_forward.1} parent=0 // pred_region
    _
  $region5: #{mlp_forward.1} parent=0 // pred_fallthru
    _
  // Predicated region
  $region6: #{mlp_forward.1} parent=0 // pred_check
    _
  $region7: #{mlp_forward.1} parent=0 // pred_check_branch
    %16 = sbr.rel (0) target = $region9
  $region8: #{mlp_forward.1} parent=0 // pred_region
    _
  $region9: #{mlp_forward.1} parent=0 // pred_fallthru
    _
  // Predicated region
  $region10: #{mlp_forward.1} parent=0 // pred_check
    _
  $region11: #{mlp_forward.1} parent=0 // pred_check_branch
    %18 = sbr.rel (0) target = $region13
  $region12: #{mlp_forward.1} parent=0 // pred_region
    _
  $region13: #{mlp_forward.1} parent=0 // pred_fallthru
    _
  // Predicated region
  $region14: #{mlp_forward.1} parent=0 // pred_check
    _
  $region15: #{mlp_forward.1} parent=0 // pred_check_branch
    %20 = sbr.rel (0) target = $region17
  $region16: #{mlp_forward.1} parent=0 // pred_region
    _
  $region17: #{mlp_forward.1} parent=0 // pred_fallthru
    _
  // Predicated region
  $region18: #{mlp_forward.1} parent=0 // pred_check
    _
  $region19: #{mlp_forward.1} parent=0 // pred_check_branch
    %22 = sbr.rel (0) target = $region21
  $region20: #{mlp_forward.1} parent=0 // pred_region
    _
  $region21: #{mlp_forward.1} parent=0 // pred_fallthru
    _
  // Predicated region
  $region22: #{mlp_forward.1} parent=0 // pred_check
    _
  $region23: #{mlp_forward.1} parent=0 // pred_check_branch
    %24 = sbr.rel (0) target = $region25
  $region24: #{mlp_forward.1} parent=0 // pred_region
    _
  $region25: #{mlp_forward.1} parent=0 // pred_fallthru
    _
  %v25 = vld [vmem:[%s0] sm:$0xff]
  %v26 = vld [vmem:[%s0 + $0x8] sm:$0xff]
  %v27 = vld [vmem:[%s0 + $0x10] sm:$0xff]
  %v28 = vld [vmem:[%s1] sm:$0xff]
  %v29 = vld [vmem:[%s1 + $0x8] sm:$0xff]
  %v30 = vld [vmem:[%s1 + $0x10] sm:$0x3f]
  %vm31 = vcmask 64512
  %v33 = vsel %vm31, %v28, 0
  %v36 = vsel %vm31, %v29, 0
  %v39 = vsel %vm31, %v30, 0
  %41 = vmatprep.subr.mxu0 %v26
  %42 = vmatpush1.msra.mxu0 %v25
  %43 = vmatprep.subr.mxu0 0.0
  %44 = vmatpush1.msra.mxu0 0.0
  %45 = vmatprep.subr.mxu0 0.0
  %46 = vmatpush1.msra.mxu0 0.0
  %47 = vmatprep.subr.mxu0 0.0
  %48 = vmatpush1.msra.mxu0 0.0
  %49 = vmatprep.subr.mxu0 0.0
  %50 = vmatpush1.msra.mxu0 0.0
  %51 = vmatprep.subr.mxu0 0.0
  %52 = vmatpush1.msra.mxu0 0.0
  %53 = vmatprep.subr.mxu0 0.0
  %54 = vmatpush1.msra.mxu0 0.0
  %55 = vmatprep.subr.mxu0 0.0
  %56 = vmatpush1.msra.mxu0 0.0
  %57 = vmatprep.subr.mxu0 0.0
  %58 = vmatpush1.msra.mxu0 0.0
  %59 = vmatprep.subr.mxu0 0.0
  %60 = vmatpush1.msra.mxu0 0.0
  %61 = vmatprep.subr.mxu0 0.0
  %62 = vmatpush1.msra.mxu0 0.0
  %63 = vmatprep.subr.mxu0 0.0
  %64 = vmatpush1.msra.mxu0 0.0
  %65 = vmatprep.subr.mxu0 0.0
  %66 = vmatpush1.msra.mxu0 0.0
  %67 = vmatprep.subr.mxu0 0.0
  %68 = vmatpush1.msra.mxu0 0.0
  %69 = vmatprep.subr.mxu0 0.0
  %70 = vmatpush1.msra.mxu0 0.0
  %71 = vmatprep.subr.mxu0 0.0
  %72 = vmatpush1.msra.mxu0 0.0
  %73 = vmatprep.subr.mxu0 0.0
  %74 = vmatpush1.msra.mxu0 0.0
  %75 = vmatprep.subr.mxu0 0.0
  %76 = vmatpush1.msra.mxu0 0.0
  %77 = vmatprep.subr.mxu0 0.0
  %78 = vmatpush1.msra.mxu0 0.0
  %79 = vmatprep.subr.mxu0 0.0
  %80 = vmatpush1.msra.mxu0 0.0
  %81 = vmatprep.subr.mxu0 0.0
  %82 = vmatpush1.msra.mxu0 0.0
  %83 = vmatprep.subr.mxu0 0.0
  %84 = vmatpush1.msra.mxu0 0.0
  %85 = vmatprep.subr.mxu0 0.0
  %86 = vmatpush1.msra.mxu0 0.0
  %87 = vmatprep.subr.mxu0 0.0
  %88 = vmatpush1.msra.mxu0 0.0
  %89 = vmatprep.subr.mxu0 0.0
  %90 = vmatpush1.msra.mxu0 0.0
  %91 = vmatprep.subr.mxu0 0.0
  %92 = vmatpush1.msra.mxu0 0.0
  %93 = vmatprep.subr.mxu0 0.0
  %94 = vmatpush1.msra.mxu0 0.0
  %95 = vmatprep.subr.mxu0 0.0
  %96 = vmatpush1.msra.mxu0 0.0
  %97 = vmatprep.subr.mxu0 0.0
  %98 = vmatpush1.msra.mxu0 0.0
  %99 = vmatprep.subr.mxu0 0.0
  %100 = vmatpush1.msra.mxu0 0.0
  %101 = vmatprep.subr.mxu0 0.0
  %102 = vmatpush1.msra.mxu0 0.0
  %103 = vmatprep.subr.mxu0 0.0
  %104 = vmatpush1.msra.mxu0 0.0
  %105 = vmatprep.mubr.f32.mxu0 0.0
  %106 = vmatmul.mubr.f32.gmra.mrb[0].mxu0 %v33
  %v107 = vpop.f32.mrb[0].mxu0
  %v108 = vadd.f32 0.0, %v107
  %v109 = vpop.f32.mrb[0].mxu0
  %v110 = vadd.f32 0.0, %v109
  %111 = vmatprep.mubr.f32.mxu0 0.0
  %112 = vmatmul.mubr.f32.gmra.mrb[0].mxu0 %v36
  %v113 = vpop.f32.mrb[0].mxu0
  %v114 = vadd.f32 0.0, %v113
  %v115 = vpop.f32.mrb[0].mxu0
  %v116 = vadd.f32 0.0, %v115
  %117 = vmatprep.mubr.f32.mxu0 0.0
  %118 = vmatmul.mubr.f32.gmra.mrb[0].mxu0 %v39
  %v119 = vpop.f32.mrb[0].mxu0
  %v120 = vadd.f32 0.0, %v119
  %v121 = vpop.f32.mrb[0].mxu0
  %v122 = vadd.f32 0.0, %v121
  %123 = vdwg.mxu0
  %124 = vmatprep.subr.mxu0 0.0
  %125 = vmatpush1.msra.mxu0 %v27
  %126 = vmatprep.subr.mxu0 0.0
  %127 = vmatpush1.msra.mxu0 0.0
  %128 = vmatprep.subr.mxu0 0.0
  %129 = vmatpush1.msra.mxu0 0.0
  %130 = vmatprep.subr.mxu0 0.0
  %131 = vmatpush1.msra.mxu0 0.0
  %132 = vmatprep.subr.mxu0 0.0
  %133 = vmatpush1.msra.mxu0 0.0
  %134 = vmatprep.subr.mxu0 0.0
  %135 = vmatpush1.msra.mxu0 0.0
  %136 = vmatprep.subr.mxu0 0.0
  %137 = vmatpush1.msra.mxu0 0.0
  %138 = vmatprep.subr.mxu0 0.0
  %139 = vmatpush1.msra.mxu0 0.0
  %140 = vmatprep.subr.mxu0 0.0
  %141 = vmatpush1.msra.mxu0 0.0
  %142 = vmatprep.subr.mxu0 0.0
  %143 = vmatpush1.msra.mxu0 0.0
  %144 = vmatprep.subr.mxu0 0.0
  %145 = vmatpush1.msra.mxu0 0.0
  %146 = vmatprep.subr.mxu0 0.0
  %147 = vmatpush1.msra.mxu0 0.0
  %148 = vmatprep.subr.mxu0 0.0
  %149 = vmatpush1.msra.mxu0 0.0
  %150 = vmatprep.subr.mxu0 0.0
  %151 = vmatpush1.msra.mxu0 0.0
  %152 = vmatprep.subr.mxu0 0.0
  %153 = vmatpush1.msra.mxu0 0.0
  %154 = vmatprep.subr.mxu0 0.0
  %155 = vmatpush1.msra.mxu0 0.0
  %156 = vmatprep.subr.mxu0 0.0
  %157 = vmatpush1.msra.mxu0 0.0
  %158 = vmatprep.subr.mxu0 0.0
  %159 = vmatpush1.msra.mxu0 0.0
  %160 = vmatprep.subr.mxu0 0.0
  %161 = vmatpush1.msra.mxu0 0.0
  %162 = vmatprep.subr.mxu0 0.0
  %163 = vmatpush1.msra.mxu0 0.0
  %164 = vmatprep.subr.mxu0 0.0
  %165 = vmatpush1.msra.mxu0 0.0
  %166 = vmatprep.subr.mxu0 0.0
  %167 = vmatpush1.msra.mxu0 0.0
  %168 = vmatprep.subr.mxu0 0.0
  %169 = vmatpush1.msra.mxu0 0.0
  %170 = vmatprep.subr.mxu0 0.0
  %171 = vmatpush1.msra.mxu0 0.0
  %172 = vmatprep.subr.mxu0 0.0
  %173 = vmatpush1.msra.mxu0 0.0
  %174 = vmatprep.subr.mxu0 0.0
  %175 = vmatpush1.msra.mxu0 0.0
  %176 = vmatprep.subr.mxu0 0.0
  %177 = vmatpush1.msra.mxu0 0.0
  %178 = vmatprep.subr.mxu0 0.0
  %179 = vmatpush1.msra.mxu0 0.0
  %180 = vmatprep.subr.mxu0 0.0
  %181 = vmatpush1.msra.mxu0 0.0
  %182 = vmatprep.subr.mxu0 0.0
  %183 = vmatpush1.msra.mxu0 0.0
  %184 = vmatprep.subr.mxu0 0.0
  %185 = vmatpush1.msra.mxu0 0.0
  %186 = vmatprep.subr.mxu0 0.0
  %187 = vmatpush1.msra.mxu0 0.0
  %188 = vmatprep.mubr.f32.mxu0 0.0
  %189 = vmatmul.mubr.f32.gmra.mrb[0].mxu0 %v33
  %v190 = vpop.f32.mrb[0].mxu0
  %v191 = vadd.f32 0.0, %v190
  %v192 = vpop.f32.mrb[0].mxu0
  %193 = vmatprep.mubr.f32.mxu0 0.0
  %194 = vmatmul.mubr.f32.gmra.mrb[0].mxu0 %v36
  %v195 = vpop.f32.mrb[0].mxu0
  %v196 = vadd.f32 0.0, %v195
  %v197 = vpop.f32.mrb[0].mxu0
  %198 = vmatprep.mubr.f32.mxu0 0.0
  %199 = vmatmul.mubr.f32.gmra.mrb[0].mxu0 %v39
  %v200 = vpop.f32.mrb[0].mxu0
  %v201 = vadd.f32 0.0, %v200
  %v202 = vpop.f32.mrb[0].mxu0
  %203 = vdwg.mxu0
  %v204 = vmax.f32 %v108, 0.0
  %v205 = vmax.f32 %v110, 0.0
  %v206 = vmax.f32 %v191, 0.0
  %v207 = vmax.f32 %v114, 0.0
  %v208 = vmax.f32 %v116, 0.0
  %v209 = vmax.f32 %v196, 0.0
  %v210 = vmax.f32 %v120, 0.0
  %v211 = vmax.f32 %v122, 0.0
  %v212 = vmax.f32 %v201, 0.0
  %v213 = vld [vmem:[%s2] sm:$0xff]
  %v214 = vld [vmem:[%s2 + $0x8] sm:$0x7]
  %v215 = vld [vmem:[%s3] sm:$0xff]
  %v216 = vld [vmem:[%s3 + $0x8] sm:$0x7]
  %218 = vset.pattern.permute.xlu0 0
  %219 = vperm.xlu0 %218, %v215
  %v220 = vpop.permute.xlu0 %219
  %223 = vset.pattern.permute.xlu0 0
  %224 = vperm.xlu0 %223, %v216
  %v225 = vpop.permute.xlu0 %224
  %vm227 = vcmask 179200
  %v229 = vsel %vm227, %v213, 0
  %v232 = vsel %vm227, %v214, 0
  %vm234 = vcmask 1045504
  %v236 = vsel %vm234, %v210, 0
  %v239 = vsel %vm234, %v211, 0
  %v242 = vsel %vm234, %v212, 0
  %244 = vmatprep.subr.mxu0 %v205
  %245 = vmatpush1.msra.mxu0 %v204
  %246 = vmatprep.subr.mxu0 %v208
  %247 = vmatpush1.msra.mxu0 %v207
  %248 = vmatprep.subr.mxu0 %v239
  %249 = vmatpush1.msra.mxu0 %v236
  %250 = vmatprep.subr.mxu0 0.0
  %251 = vmatpush1.msra.mxu0 0.0
  %252 = vmatprep.subr.mxu0 0.0
  %253 = vmatpush1.msra.mxu0 0.0
  %254 = vmatprep.subr.mxu0 0.0
  %255 = vmatpush1.msra.mxu0 0.0
  %256 = vmatprep.subr.mxu0 0.0
  %257 = vmatpush1.msra.mxu0 0.0
  %258 = vmatprep.subr.mxu0 0.0
  %259 = vmatpush1.msra.mxu0 0.0
  %260 = vmatprep.subr.mxu0 0.0
  %261 = vmatpush1.msra.mxu0 0.0
  %262 = vmatprep.subr.mxu0 0.0
  %263 = vmatpush1.msra.mxu0 0.0
  %264 = vmatprep.subr.mxu0 0.0
  %265 = vmatpush1.msra.mxu0 0.0
  %266 = vmatprep.subr.mxu0 0.0
  %267 = vmatpush1.msra.mxu0 0.0
  %268 = vmatprep.subr.mxu0 0.0
  %269 = vmatpush1.msra.mxu0 0.0
  %270 = vmatprep.subr.mxu0 0.0
  %271 = vmatpush1.msra.mxu0 0.0
  %272 = vmatprep.subr.mxu0 0.0
  %273 = vmatpush1.msra.mxu0 0.0
  %274 = vmatprep.subr.mxu0 0.0
  %275 = vmatpush1.msra.mxu0 0.0
  %276 = vmatprep.subr.mxu0 0.0
  %277 = vmatpush1.msra.mxu0 0.0
  %278 = vmatprep.subr.mxu0 0.0
  %279 = vmatpush1.msra.mxu0 0.0
  %280 = vmatprep.subr.mxu0 0.0
  %281 = vmatpush1.msra.mxu0 0.0
  %282 = vmatprep.subr.mxu0 0.0
  %283 = vmatpush1.msra.mxu0 0.0
  %284 = vmatprep.subr.mxu0 0.0
  %285 = vmatpush1.msra.mxu0 0.0
  %286 = vmatprep.subr.mxu0 0.0
  %287 = vmatpush1.msra.mxu0 0.0
  %288 = vmatprep.subr.mxu0 0.0
  %289 = vmatpush1.msra.mxu0 0.0
  %290 = vmatprep.subr.mxu0 0.0
  %291 = vmatpush1.msra.mxu0 0.0
  %292 = vmatprep.subr.mxu0 0.0
  %293 = vmatpush1.msra.mxu0 0.0
  %294 = vmatprep.subr.mxu0 0.0
  %295 = vmatpush1.msra.mxu0 0.0
  %296 = vmatprep.subr.mxu0 0.0
  %297 = vmatpush1.msra.mxu0 0.0
  %298 = vmatprep.subr.mxu0 0.0
  %299 = vmatpush1.msra.mxu0 0.0
  %300 = vmatprep.subr.mxu0 0.0
  %301 = vmatpush1.msra.mxu0 0.0
  %302 = vmatprep.subr.mxu0 0.0
  %303 = vmatpush1.msra.mxu0 0.0
  %304 = vmatprep.subr.mxu0 0.0
  %305 = vmatpush1.msra.mxu0 0.0
  %306 = vmatprep.subr.mxu0 0.0
  %307 = vmatpush1.msra.mxu0 0.0
  %308 = vmatprep.mubr.f32.mxu0 0.0
  %309 = vmatmul.mubr.f32.gmra.mrb[0].mxu0 %v229
  %v310 = vpop.f32.mrb[0].mxu0
  %v311 = vadd.f32 %v220, %v310
  %v312 = vpop.f32.mrb[0].mxu0
  %v313 = vadd.f32 %v220, %v312
  %314 = vmatprep.mubr.f32.mxu0 0.0
  %315 = vmatmul.mubr.f32.gmra.mrb[0].mxu0 %v232
  %v316 = vpop.f32.mrb[0].mxu0
  %v317 = vadd.f32 %v225, %v316
  %v318 = vpop.f32.mrb[0].mxu0
  %v319 = vadd.f32 %v225, %v318
  %320 = vdwg.mxu0
  %321 = vmatprep.subr.mxu0 0.0
  %322 = vmatpush1.msra.mxu0 %v206
  %323 = vmatprep.subr.mxu0 0.0
  %324 = vmatpush1.msra.mxu0 %v209
  %325 = vmatprep.subr.mxu0 0.0
  %326 = vmatpush1.msra.mxu0 %v242
  %327 = vmatprep.subr.mxu0 0.0
  %328 = vmatpush1.msra.mxu0 0.0
  %329 = vmatprep.subr.mxu0 0.0
  %330 = vmatpush1.msra.mxu0 0.0
  %331 = vmatprep.subr.mxu0 0.0
  %332 = vmatpush1.msra.mxu0 0.0
  %333 = vmatprep.subr.mxu0 0.0
  %334 = vmatpush1.msra.mxu0 0.0
  %335 = vmatprep.subr.mxu0 0.0
  %336 = vmatpush1.msra.mxu0 0.0
  %337 = vmatprep.subr.mxu0 0.0
  %338 = vmatpush1.msra.mxu0 0.0
  %339 = vmatprep.subr.mxu0 0.0
  %340 = vmatpush1.msra.mxu0 0.0
  %341 = vmatprep.subr.mxu0 0.0
  %342 = vmatpush1.msra.mxu0 0.0
  %343 = vmatprep.subr.mxu0 0.0
  %344 = vmatpush1.msra.mxu0 0.0
  %345 = vmatprep.subr.mxu0 0.0
  %346 = vmatpush1.msra.mxu0 0.0
  %347 = vmatprep.subr.mxu0 0.0
  %348 = vmatpush1.msra.mxu0 0.0
  %349 = vmatprep.subr.mxu0 0.0
  %350 = vmatpush1.msra.mxu0 0.0
  %351 = vmatprep.subr.mxu0 0.0
  %352 = vmatpush1.msra.mxu0 0.0
  %353 = vmatprep.subr.mxu0 0.0
  %354 = vmatpush1.msra.mxu0 0.0
  %355 = vmatprep.subr.mxu0 0.0
  %356 = vmatpush1.msra.mxu0 0.0
  %357 = vmatprep.subr.mxu0 0.0
  %358 = vmatpush1.msra.mxu0 0.0
  %359 = vmatprep.subr.mxu0 0.0
  %360 = vmatpush1.msra.mxu0 0.0
  %361 = vmatprep.subr.mxu0 0.0
  %362 = vmatpush1.msra.mxu0 0.0
  %363 = vmatprep.subr.mxu0 0.0
  %364 = vmatpush1.msra.mxu0 0.0
  %365 = vmatprep.subr.mxu0 0.0
  %366 = vmatpush1.msra.mxu0 0.0
  %367 = vmatprep.subr.mxu0 0.0
  %368 = vmatpush1.msra.mxu0 0.0
  %369 = vmatprep.subr.mxu0 0.0
  %370 = vmatpush1.msra.mxu0 0.0
  %371 = vmatprep.subr.mxu0 0.0
  %372 = vmatpush1.msra.mxu0 0.0
  %373 = vmatprep.subr.mxu0 0.0
  %374 = vmatpush1.msra.mxu0 0.0
  %375 = vmatprep.subr.mxu0 0.0
  %376 = vmatpush1.msra.mxu0 0.0
  %377 = vmatprep.subr.mxu0 0.0
  %378 = vmatpush1.msra.mxu0 0.0
  %379 = vmatprep.subr.mxu0 0.0
  %380 = vmatpush1.msra.mxu0 0.0
  %381 = vmatprep.subr.mxu0 0.0
  %382 = vmatpush1.msra.mxu0 0.0
  %383 = vmatprep.subr.mxu0 0.0
  %384 = vmatpush1.msra.mxu0 0.0
  %385 = vmatprep.mubr.f32.mxu0 0.0
  %386 = vmatmul.mubr.f32.gmra.mrb[0].mxu0 %v229
  %v387 = vpop.f32.mrb[0].mxu0
  %v388 = vadd.f32 %v220, %v387
  %v389 = vpop.f32.mrb[0].mxu0
  %390 = vmatprep.mubr.f32.mxu0 0.0
  %391 = vmatmul.mubr.f32.gmra.mrb[0].mxu0 %v232
  %v392 = vpop.f32.mrb[0].mxu0
  %v393 = vadd.f32 %v225, %v392
  %v394 = vpop.f32.mrb[0].mxu0
  %395 = vdwg.mxu0
  %v396 = vmax.f32 %v311, 0.0
  %v397 = vmax.f32 %v313, 0.0
  %v398 = vmax.f32 %v388, 0.0
  %v399 = vmax.f32 %v317, 0.0
  %v400 = vmax.f32 %v319, 0.0
  %v401 = vmax.f32 %v393, 0.0
  %v402 = vld [vmem:[%s4] sm:$0xff]
  %v403 = vld [vmem:[%s4 + $0x8] sm:$0x7]
  %405 = vset.pattern.permute.xlu0 0
  %406 = vperm.xlu0 %405, %v402
  %v407 = vpop.permute.xlu0 %406
  %410 = vset.pattern.permute.xlu0 0
  %411 = vperm.xlu0 %410, %v403
  %v412 = vpop.permute.xlu0 %411
  %v414 = vmul.f32 %v407, %v396
  %v415 = vmul.f32 %v407, %v397
  %v416 = vmul.f32 %v407, %v398
  %v417 = vmul.f32 %v412, %v399
  %v418 = vmul.f32 %v412, %v400
  %v419 = vmul.f32 %v412, %v401
  %vm420 = vcmask 1042432
  %v421 = vsel %vm420, %v417, 0.0
  %v422 = vadd.f32 %v414, %v421
  %v423 = vrot.slane %v422, 4
  %v424 = vadd.f32 %v422, %v423
  %v425 = vrot.slane %v424, 2
  %v426 = vadd.f32 %v424, %v425
  %v427 = vrot.slane %v426, 1
  %v428 = vadd.f32 %v426, %v427
  %v429 = vsel %vm420, %v418, 0.0
  %v430 = vadd.f32 %v415, %v429
  %v431 = vrot.slane %v430, 4
  %v432 = vadd.f32 %v430, %v431
  %v433 = vrot.slane %v432, 2
  %v434 = vadd.f32 %v432, %v433
  %v435 = vrot.slane %v434, 1
  %v436 = vadd.f32 %v434, %v435
  %v437 = vsel %vm420, %v419, 0.0
  %v438 = vadd.f32 %v416, %v437
  %v439 = vrot.slane %v438, 4
  %v440 = vadd.f32 %v438, %v439
  %v441 = vrot.slane %v440, 2
  %v442 = vadd.f32 %v440, %v441
  %v443 = vrot.slane %v442, 1
  %v444 = vadd.f32 %v442, %v443
  %v445 = vld [vmem:[#allocation2] sm:$0x1]
  %447 = vset.pattern.permute.xlu0 0
  %448 = vperm.xlu0 %447, %v445
  %v449 = vpop.permute.xlu0 %448
  %v451 = vlaneseq
  %v452 = vshrl.u32 %v451, 7
  %v453 = vsub.s32 0, %v452
  %v454 = vrot.slane %v449, %v453
  %v455 = vadd.f32 %v428, %v454
  %v456 = vadd.f32 %v436, %v454
  %v457 = vadd.f32 %v444, %v454
  %v458 = vxor.u32 %v455, 2147483648
  %v459 = vxor.u32 %v456, 2147483648
  %v460 = vxor.u32 %v457, 2147483648
  %v461 = vmul.f32 %v458, 1.442695
  %v462 = vpow.pop %v461
  %v463 = vmul.f32 %v459, 1.442695
  %v464 = vpow.pop %v463
  %v465 = vmul.f32 %v460, 1.442695
  %v466 = vpow.pop %v465
  %v467 = vadd.f32 %v462, 1.0
  %v468 = vadd.f32 %v464, 1.0
  %v469 = vadd.f32 %v466, 1.0
  %v470 = vrcp.pop %v467
  %v471 = vmul.f32 1.0, %v470
  %v472 = vrcp.pop %v468
  %v473 = vmul.f32 1.0, %v472
  %v474 = vrcp.pop %v469
  %v475 = vmul.f32 1.0, %v474
  %v479 = vcombine.low %v471, %v473
  %v481 = vunpack.c.l.s4 1966171168
  %v482 = vunpack.c.0.s8 %v481
  %v483 = vlaneseq
  %v484 = vshrl.u32 %v483, 7
  %v485 = vsub.s32 %v482, %v484
  %v486 = vrot.slane %v479, %v485
  %v488 = vunpack.c.l.s4 1966171168
  %v489 = vunpack.c.0.s8 %v488
  %v490 = vlaneseq
  %v491 = vshrl.u32 %v490, 7
  %v492 = vsub.s32 %v489, %v491
  %v493 = vrot.slane %v475, %v492
  %v494 = vcombine.low %v486, %v493
  %v496 = vunpack.c.l.s4 1966171168
  %v497 = vunpack.c.0.s8 %v496
  %v498 = vlaneseq
  %v499 = vshrl.u32 %v498, 7
  %v500 = vsub.s32 %v497, %v499
  %v501 = vrot.slane %v494, %v500
  %v503 = vlaneseq
  %vm504 = vcmp.ge.s32.totalorder %v503, 0
  %vm505 = vcmp.lt.s32.totalorder %v503, 384
  %vm506 = vmand %vm504, %vm505
  %507 = vst.msk [vmem:[%s6] sm:$0x7] %vm506, %v501
  // Predicated region
  $region26: #{mlp_forward.1} parent=0 // pred_check
    _
  $region27: #{mlp_forward.1} parent=0 // pred_check_branch
    %509 = sbr.rel (0) target = $region29
  $region28: #{mlp_forward.1} parent=0 // pred_region
    _
  $region29: #{mlp_forward.1} parent=0 // pred_fallthru
    _
  // Predicated region
  $region30: #{mlp_forward.1} parent=0 // pred_check
    _
  $region31: #{mlp_forward.1} parent=0 // pred_check_branch
    %511 = sbr.rel (0) target = $region33
  $region32: #{mlp_forward.1} parent=0 // pred_region
    _
  $region33: #{mlp_forward.1} parent=0 // pred_fallthru
    _

</llo_original>
